<compile_context>
chip_gen: v5e
topology: v5e:2x2
jax: 0.10.0
libtpu: 0.0.40
codegen_flags: <defaults>
</compile_context>

<pallas_src>
import jax
import jax.numpy as jnp
from jax.experimental import pallas as pl
from jax.experimental.pallas import tpu as pltpu

LANE = 128      # lane width (last dim)
SUBLANE = 8     # sublane width (second-to-last dim)

# Capability gate for single-buffered invariant operands (no try/except fallback).
_HAS_BUFFERED = hasattr(pl, "Buffered")


def _round_up(n, m):
    return ((n + m - 1) // m) * m


def qmix_mlp_kernel(x_ref,
                    w1_ref, b1_ref,
                    w2_ref, b2_ref,
                    w3_ref, b3_ref,
                    w4_ref, b4_ref,
                    o_ref):
    """One batch tile of the QMix MLP: 4 MXU matmuls with f32 accumulation,
    bias-add + ReLU on the VPU in f32."""
    x = x_ref[...]                                                    # (tb, in)

    # fc1 + relu
    h = jnp.dot(x, w1_ref[...], preferred_element_type=jnp.float32)
    h = jnp.maximum(h + b1_ref[...], 0.0)

    # fc2 + relu
    h = jnp.dot(h.astype(w2_ref.dtype), w2_ref[...],
                preferred_element_type=jnp.float32)
    h = jnp.maximum(h + b2_ref[...], 0.0)

    # dropout(p=0.3): identity in eval/inference mode.
    # TODO(synk): training-mode dropout (pltpu.prng_seed + prng_random_bits mask
    # with 1/(1-p) rescale) omitted to match eval semantics.

    # fc3 + relu
    h = jnp.dot(h.astype(w3_ref.dtype), w3_ref[...],
                preferred_element_type=jnp.float32)
    h = jnp.maximum(h + b3_ref[...], 0.0)

    # fc4 (no activation); out features are zero-padded to a lane-dense width so
    # this store is a full-lane unmasked vst.
    y = jnp.dot(h.astype(w4_ref.dtype), w4_ref[...],
                preferred_element_type=jnp.float32)
    o_ref[...] = (y + b4_ref[...]).astype(o_ref.dtype)


def _choose_tiling(B, tb):
    """Pick (tb_eff, b_pad): big MXU-filling tiles, single step for tiny
    batches, and >= 2 grid steps for medium/large batches (v7x megacore)."""
    tb_req = _round_up(max(tb, SUBLANE), SUBLANE)
    b_pad8 = _round_up(B, SUBLANE)
    n_steps = max(1, pl.cdiv(b_pad8, tb_req))
    # v7x megacore: once a batch is big enough that splitting is cheap,
    # keep at least 2 grid steps so both TensorCores get a tile.
    if b_pad8 >= 256:
        n_steps = max(n_steps, 2)
    tb_eff = _round_up(pl.cdiv(b_pad8, n_steps), SUBLANE)
    b_pad = _round_up(b_pad8, tb_eff)
    return tb_eff, b_pad


def qmix_forward(x, params, *, tb=2048, use_bf16=True,
                 single_buffer_weights=True, out_buffering=None):
    """x: (B, input_size) float32. params: dict of (in,out)-layout weights/biases.

    tb: batch tile (sweep 1024-2048; automatically capped for small B and split
        into >=2 tiles for medium/large B so v7x can use both TensorCores).
    use_bf16: cast x + weights to bf16 for the MXU and emit the padded output
        stream in bf16 (fast path on v5e/v6e/v7x); f32 accumulation throughout.
    out_buffering: optional pipeline depth for the output stream (e.g. 3) if
        profiling shows exposed writeback DMA at large tiles; default depth 2.
    """
    B, in_size = x.shape
    hidden = params["w1"].shape[1]
    out_size = params["w4"].shape[1]

    tb_eff, b_pad = _choose_tiling(B, tb)
    grid = (b_pad // tb_eff,)

    # --- Lane-dense output: pad fc4 out-features up to a multiple of 128.
    out_pad = _round_up(out_size, LANE)
    w4 = params["w4"]
    b4 = params["b4"]
    if out_pad != out_size:
        w4 = jnp.pad(w4, ((0, 0), (0, out_pad - out_size)))
        b4 = jnp.pad(b4, ((0, 0), (0, out_pad - out_size)))

    # --- Ragged batch: zero-pad, slice back at the end.
    if b_pad != B:
        x = jnp.pad(x, ((0, b_pad - B), (0, 0)))

    # --- bf16 MXU operands: native fast path on ALL generations (v5e/v6e/v7x)
    # and half the x/weight HBM bytes.  Biases stay f32; bias-add/ReLU stay f32
    # on the VPU (v5e has no bf16 VALU).
    mxu_dtype = jnp.bfloat16 if use_bf16 else jnp.float32
    # The padded output (b_pad x 128) is the dominant HBM stream; emit it in
    # bf16 in the fast path and cast back to f32 after slicing.
    out_dtype = jnp.bfloat16 if use_bf16 else jnp.float32

    x_in = x.astype(mxu_dtype)
    w1 = params["w1"].astype(mxu_dtype)
    w2 = params["w2"].astype(mxu_dtype)
    w3 = params["w3"].astype(mxu_dtype)
    w4 = w4.astype(mxu_dtype)
    b1, b2, b3 = params["b1"], params["b2"], params["b3"]
    b4 = b4.astype(jnp.float32)

    # Grid-invariant weights/biases: single-buffer (they are never re-fetched).
    wkw = {}
    if single_buffer_weights and _HAS_BUFFERED:
        wkw = dict(pipeline_mode=pl.Buffered(1))

    def invariant(shape):
        return pl.BlockSpec(shape, lambda i: (0, 0), **wkw)

    in_specs = [
        pl.BlockSpec((tb_eff, in_size), lambda i: (i, 0)),   # x: tile over batch
        invariant(w1.shape), invariant(b1.shape),
        invariant(w2.shape), invariant(b2.shape),
        invariant(w3.shape), invariant(b3.shape),
        invariant(w4.shape), invariant(b4.shape),
    ]
    okw = {}
    if out_buffering is not None and _HAS_BUFFERED:
        okw = dict(pipeline_mode=pl.Buffered(out_buffering))
    out_specs = pl.BlockSpec((tb_eff, out_pad), lambda i: (i, 0), **okw)

    itemsize_in = jnp.dtype(mxu_dtype).itemsize
    itemsize_out = jnp.dtype(out_dtype).itemsize
    weight_bytes = sum(a.size * a.dtype.itemsize
                       for a in (w1, b1, w2, b2, w3, b3, w4, b4))

    # Rough per-call VMEM estimate: double-buffered x & out blocks, weights,
    # plus the f32 intermediates the compiler materializes.
    vmem_est = (2 * tb_eff * in_size * itemsize_in
                + 2 * tb_eff * out_pad * itemsize_out
                + weight_bytes
                + 4 * tb_eff * max(hidden, out_pad) * 4)
    compiler_kwargs = dict(dimension_semantics=("parallel",))
    # Only raise the scoped-VMEM limit when huge tiles would approach v5e's
    # 16 MiB default; cap well under v7x's 64 MiB physical VMEM.
    if vmem_est > 12 * 1024 * 1024:
        compiler_kwargs["vmem_limit_bytes"] = int(
            min(2 * vmem_est, 48 * 1024 * 1024))

    # Advisory cost estimate for XLA scheduling.
    flops = 2 * b_pad * (in_size * hidden + 2 * hidden * hidden + hidden * out_pad)
    bytes_accessed = (x_in.size * x_in.dtype.itemsize
                      + weight_bytes
                      + b_pad * out_pad * itemsize_out)
    cost = pl.CostEstimate(flops=flops, transcendentals=0,
                           bytes_accessed=bytes_accessed)

    out = pl.pallas_call(
        qmix_mlp_kernel,
        out_shape=jax.ShapeDtypeStruct((b_pad, out_pad), out_dtype),
        grid_spec=pltpu.PrefetchScalarGridSpec(
            num_scalar_prefetch=0,
            grid=grid,
            in_specs=in_specs,
            out_specs=out_specs,
        ),
        compiler_params=pltpu.CompilerParams(**compiler_kwargs),
        cost_estimate=cost,
    )(x_in, w1, b1, w2, b2, w3, b3, w4, b4)

    return out[:B, :out_size].astype(jnp.float32)


def init_params(key, input_size, hidden_size, output_size):
    """Deterministic init mimicking nn.Linear's U(-1/sqrt(fan_in), 1/sqrt(fan_in)).

    Weights stored as (in_features, out_features) so the kernel computes
    y = x @ W + b (transpose of PyTorch's storage; identical math)."""
    keys = jax.random.split(key, 8)

    def linear(kw, kb, fan_in, fan_out):
        bound = 1.0 / jnp.sqrt(jnp.float32(fan_in))
        w = jax.random.uniform(kw, (fan_in, fan_out), jnp.float32, -bound, bound)
        b = jax.random.uniform(kb, (1, fan_out), jnp.float32, -bound, bound)
        return w, b

    w1, b1 = linear(keys[0], keys[1], input_size, hidden_size)
    w2, b2 = linear(keys[2], keys[3], hidden_size, hidden_size)
    w3, b3 = linear(keys[4], keys[5], hidden_size, hidden_size)
    w4, b4 = linear(keys[6], keys[7], hidden_size, output_size)
    return dict(w1=w1, b1=b1, w2=w2, b2=b2, w3=w3, b3=b3, w4=w4, b4=b4)


def qmix_reference(x, p):
    """Pure-JAX reference of the same forward pass (eval-mode dropout)."""
    h = jax.nn.relu(x @ p["w1"] + p["b1"])
    h = jax.nn.relu(h @ p["w2"] + p["b2"])
    h = jax.nn.relu(h @ p["w3"] + p["b3"])
    return h @ p["w4"] + p["b4"]


if __name__ == "__main__":
    # Small shapes consistent with the module: x is (batch, input_size).
    batch, input_size, hidden_size, output_size = 16, 32, 64, 8

    key = jax.random.PRNGKey(0)
    k_params, k_x, k_big = jax.random.split(key, 3)
    params = init_params(k_params, input_size, hidden_size, output_size)
    x = jax.random.normal(k_x, (batch, input_size), jnp.float32)

    ref = qmix_reference(x, params)

    # f32 path (tight tolerance).
    out = jax.block_until_ready(qmix_forward(x, params, use_bf16=False))
    assert out.shape == (batch, output_size)
    assert jnp.allclose(out, ref, atol=1e-4, rtol=1e-4), "f32 mismatch vs reference"

    # Default fast path: bf16 MXU operands + bf16 output stream (looser tolerance).
    out_bf16 = jax.block_until_ready(qmix_forward(x, params))
    assert out_bf16.shape == (batch, output_size)
    assert jnp.allclose(out_bf16, ref, atol=5e-2, rtol=5e-2), "bf16 mismatch vs reference"

    # Ragged batch (B=13 -> one padded 16-row tile).
    x13 = x[:13]
    out13 = jax.block_until_ready(qmix_forward(x13, params, use_bf16=False))
    assert out13.shape == (13, output_size)
    assert jnp.allclose(out13, ref[:13], atol=1e-4, rtol=1e-4), "ragged mismatch"

    # Medium batch: exercises the >=2-step grid (v7x megacore split) path.
    x_big = jax.random.normal(k_big, (272, input_size), jnp.float32)
    ref_big = qmix_reference(x_big, params)
    out_big = jax.block_until_ready(qmix_forward(x_big, params, use_bf16=False))
    assert out_big.shape == (272, output_size)
    assert jnp.allclose(out_big, ref_big, atol=1e-4, rtol=1e-4), "multi-tile mismatch"

    print("KERNEL_OK")
</pallas_src>

<mosaic_0001>
module attributes {stable_mosaic.version = 11 : i64} {
  func.func @qmix_mlp_kernel(%arg0: i32, %arg1: memref<16x32xf32, #tpu.memory_space<vmem>>, %arg2: memref<32x64xf32, #tpu.memory_space<vmem>>, %arg3: memref<1x64xf32, #tpu.memory_space<vmem>>, %arg4: memref<64x64xf32, #tpu.memory_space<vmem>>, %arg5: memref<1x64xf32, #tpu.memory_space<vmem>>, %arg6: memref<64x64xf32, #tpu.memory_space<vmem>>, %arg7: memref<1x64xf32, #tpu.memory_space<vmem>>, %arg8: memref<64x128xf32, #tpu.memory_space<vmem>>, %arg9: memref<1x128xf32, #tpu.memory_space<vmem>>, %arg10: memref<16x128xf32, #tpu.memory_space<vmem>>) attributes {dimension_semantics = [#tpu.dimension_semantics<parallel>], iteration_bounds = array<i64: 1>, scalar_prefetch = 0 : i64, scratch_operands = 0 : i64, tpu.core_type = #tpu.core_type<tc>, window_params = [{transform_indices = @transform_0, window_bounds = array<i64: 16, 32>}, {pipeline_mode = #tpu.pipeline_mode<synchronous>, transform_indices = @transform_1, window_bounds = array<i64: 32, 64>}, {pipeline_mode = #tpu.pipeline_mode<synchronous>, transform_indices = @transform_2, window_bounds = array<i64: 1, 64>}, {pipeline_mode = #tpu.pipeline_mode<synchronous>, transform_indices = @transform_3, window_bounds = array<i64: 64, 64>}, {pipeline_mode = #tpu.pipeline_mode<synchronous>, transform_indices = @transform_4, window_bounds = array<i64: 1, 64>}, {pipeline_mode = #tpu.pipeline_mode<synchronous>, transform_indices = @transform_5, window_bounds = array<i64: 64, 64>}, {pipeline_mode = #tpu.pipeline_mode<synchronous>, transform_indices = @transform_6, window_bounds = array<i64: 1, 64>}, {pipeline_mode = #tpu.pipeline_mode<synchronous>, transform_indices = @transform_7, window_bounds = array<i64: 64, 128>}, {pipeline_mode = #tpu.pipeline_mode<synchronous>, transform_indices = @transform_8, window_bounds = array<i64: 1, 128>}, {transform_indices = @transform_9, window_bounds = array<i64: 16, 128>}]} {
    %c0 = arith.constant 0 : index
    %c0_0 = arith.constant 0 : index
    %0 = vector.load %arg1[%c0, %c0_0] : memref<16x32xf32, #tpu.memory_space<vmem>>, vector<16x32xf32>
    %c0_1 = arith.constant 0 : index
    %c0_2 = arith.constant 0 : index
    %1 = vector.load %arg2[%c0_1, %c0_2] : memref<32x64xf32, #tpu.memory_space<vmem>>, vector<32x64xf32>
    %cst = arith.constant dense<0.000000e+00> : vector<16x64xf32>
    %2 = tpu.matmul %0, %1, %cst {dimension_numbers = #tpu.dot_dimension_numbers<[1], [0], [0], [1], [0, 0, 1, 1], [], []>} : vector<16x32xf32>, vector<32x64xf32>, vector<16x64xf32> -> vector<16x64xf32>
    %c0_3 = arith.constant 0 : index
    %c0_4 = arith.constant 0 : index
    %3 = vector.load %arg3[%c0_3, %c0_4] : memref<1x64xf32, #tpu.memory_space<vmem>>, vector<1x64xf32>
    %4 = vector.broadcast %3 : vector<1x64xf32> to vector<16x64xf32>
    %5 = arith.addf %2, %4 : vector<16x64xf32>
    %cst_5 = arith.constant 0.000000e+00 : f32
    %6 = vector.broadcast %cst_5 : f32 to vector<16x64xf32>
    %7 = arith.maximumf %5, %6 : vector<16x64xf32>
    %c0_6 = arith.constant 0 : index
    %c0_7 = arith.constant 0 : index
    %8 = vector.load %arg4[%c0_6, %c0_7] : memref<64x64xf32, #tpu.memory_space<vmem>>, vector<64x64xf32>
    %cst_8 = arith.constant dense<0.000000e+00> : vector<16x64xf32>
    %9 = tpu.matmul %7, %8, %cst_8 {dimension_numbers = #tpu.dot_dimension_numbers<[1], [0], [0], [1], [0, 0, 1, 1], [], []>} : vector<16x64xf32>, vector<64x64xf32>, vector<16x64xf32> -> vector<16x64xf32>
    %c0_9 = arith.constant 0 : index
    %c0_10 = arith.constant 0 : index
    %10 = vector.load %arg5[%c0_9, %c0_10] : memref<1x64xf32, #tpu.memory_space<vmem>>, vector<1x64xf32>
    %11 = vector.broadcast %10 : vector<1x64xf32> to vector<16x64xf32>
    %12 = arith.addf %9, %11 : vector<16x64xf32>
    %cst_11 = arith.constant 0.000000e+00 : f32
    %13 = vector.broadcast %cst_11 : f32 to vector<16x64xf32>
    %14 = arith.maximumf %12, %13 : vector<16x64xf32>
    %c0_12 = arith.constant 0 : index
    %c0_13 = arith.constant 0 : index
    %15 = vector.load %arg6[%c0_12, %c0_13] : memref<64x64xf32, #tpu.memory_space<vmem>>, vector<64x64xf32>
    %cst_14 = arith.constant dense<0.000000e+00> : vector<16x64xf32>
    %16 = tpu.matmul %14, %15, %cst_14 {dimension_numbers = #tpu.dot_dimension_numbers<[1], [0], [0], [1], [0, 0, 1, 1], [], []>} : vector<16x64xf32>, vector<64x64xf32>, vector<16x64xf32> -> vector<16x64xf32>
    %c0_15 = arith.constant 0 : index
    %c0_16 = arith.constant 0 : index
    %17 = vector.load %arg7[%c0_15, %c0_16] : memref<1x64xf32, #tpu.memory_space<vmem>>, vector<1x64xf32>
    %18 = vector.broadcast %17 : vector<1x64xf32> to vector<16x64xf32>
    %19 = arith.addf %16, %18 : vector<16x64xf32>
    %cst_17 = arith.constant 0.000000e+00 : f32
    %20 = vector.broadcast %cst_17 : f32 to vector<16x64xf32>
    %21 = arith.maximumf %19, %20 : vector<16x64xf32>
    %c0_18 = arith.constant 0 : index
    %c0_19 = arith.constant 0 : index
    %22 = vector.load %arg8[%c0_18, %c0_19] : memref<64x128xf32, #tpu.memory_space<vmem>>, vector<64x128xf32>
    %cst_20 = arith.constant dense<0.000000e+00> : vector<16x128xf32>
    %23 = tpu.matmul %21, %22, %cst_20 {dimension_numbers = #tpu.dot_dimension_numbers<[1], [0], [0], [1], [0, 0, 1, 1], [], []>} : vector<16x64xf32>, vector<64x128xf32>, vector<16x128xf32> -> vector<16x128xf32>
    %c0_21 = arith.constant 0 : index
    %c0_22 = arith.constant 0 : index
    %24 = vector.load %arg9[%c0_21, %c0_22] : memref<1x128xf32, #tpu.memory_space<vmem>>, vector<1x128xf32>
    %25 = vector.broadcast %24 : vector<1x128xf32> to vector<16x128xf32>
    %26 = arith.addf %23, %25 : vector<16x128xf32>
    %c0_23 = arith.constant 0 : index
    %c0_24 = arith.constant 0 : index
    %27 = vector.load %arg10[%c0_23, %c0_24] : memref<16x128xf32, #tpu.memory_space<vmem>>, vector<16x128xf32>
    tpu.vector_store %arg10[%c0_23, %c0_24], %26 {strides = array<i32>} : memref<16x128xf32, #tpu.memory_space<vmem>>, vector<16x128xf32>,
    return
  }
  func.func @transform_0(%arg0: i32) -> (i32, i32) {
    %c0_i32 = arith.constant 0 : i32
    %c0_i32_0 = arith.constant 0 : i32
    return %arg0, %c0_i32 : i32, i32
  }
  func.func @transform_1(%arg0: i32) -> (i32, i32) {
    %c0_i32 = arith.constant 0 : i32
    %c0_i32_0 = arith.constant 0 : i32
    %c0_i32_1 = arith.constant 0 : i32
    return %c0_i32, %c0_i32_0 : i32, i32
  }
  func.func @transform_2(%arg0: i32) -> (i32, i32) {
    %c0_i32 = arith.constant 0 : i32
    %c0_i32_0 = arith.constant 0 : i32
    %c0_i32_1 = arith.constant 0 : i32
    return %c0_i32, %c0_i32_0 : i32, i32
  }
  func.func @transform_3(%arg0: i32) -> (i32, i32) {
    %c0_i32 = arith.constant 0 : i32
    %c0_i32_0 = arith.constant 0 : i32
    %c0_i32_1 = arith.constant 0 : i32
    return %c0_i32, %c0_i32_0 : i32, i32
  }
  func.func @transform_4(%arg0: i32) -> (i32, i32) {
    %c0_i32 = arith.constant 0 : i32
    %c0_i32_0 = arith.constant 0 : i32
    %c0_i32_1 = arith.constant 0 : i32
    return %c0_i32, %c0_i32_0 : i32, i32
  }
  func.func @transform_5(%arg0: i32) -> (i32, i32) {
    %c0_i32 = arith.constant 0 : i32
    %c0_i32_0 = arith.constant 0 : i32
    %c0_i32_1 = arith.constant 0 : i32
    return %c0_i32, %c0_i32_0 : i32, i32
  }
  func.func @transform_6(%arg0: i32) -> (i32, i32) {
    %c0_i32 = arith.constant 0 : i32
    %c0_i32_0 = arith.constant 0 : i32
    %c0_i32_1 = arith.constant 0 : i32
    return %c0_i32, %c0_i32_0 : i32, i32
  }
  func.func @transform_7(%arg0: i32) -> (i32, i32) {
    %c0_i32 = arith.constant 0 : i32
    %c0_i32_0 = arith.constant 0 : i32
    %c0_i32_1 = arith.constant 0 : i32
    return %c0_i32, %c0_i32_0 : i32, i32
  }
  func.func @transform_8(%arg0: i32) -> (i32, i32) {
    %c0_i32 = arith.constant 0 : i32
    %c0_i32_0 = arith.constant 0 : i32
    %c0_i32_1 = arith.constant 0 : i32
    return %c0_i32, %c0_i32_0 : i32, i32
  }
  func.func @transform_9(%arg0: i32) -> (i32, i32) {
    %c0_i32 = arith.constant 0 : i32
    %c0_i32_0 = arith.constant 0 : i32
    return %arg0, %c0_i32 : i32, i32
  }
}

</mosaic_0001>

<llo_original>
// kernel: tpu_custom_call.1
$region0: #{tpu_custom_call.1}
  #allocation0 [shape = 'u32[]', space=smem, size = 0x4, offset = 0x4, fixed_abs, tag = 'smem constant byte address 0x4 - core index']
  #allocation1 [shape = 'u32[72,128]{1,0:T(1,128)}', space=vmem, size = 0x9000, scoped, tag = 'internal scratch']
  %s0 = inlined_call_operand.hbm [shape: f32[16,32], index: 0, kind: input, shape index: {}]
  %s1 = inlined_call_operand.hbm [shape: f32[32,64], index: 1, kind: input, shape index: {}]
  %s2 = inlined_call_operand.vmem [shape: f32[1,64], index: 2, kind: input, shape index: {}]
  %s3 = inlined_call_operand.hbm [shape: f32[64,64], index: 3, kind: input, shape index: {}]
  %s4 = inlined_call_operand.vmem [shape: f32[1,64], index: 4, kind: input, shape index: {}]
  %s5 = inlined_call_operand.hbm [shape: f32[64,64], index: 5, kind: input, shape index: {}]
  %s6 = inlined_call_operand.vmem [shape: f32[1,64], index: 6, kind: input, shape index: {}]
  %s7 = inlined_call_operand.hbm [shape: f32[64,128], index: 7, kind: input, shape index: {}]
  %s8 = inlined_call_operand.vmem [shape: f32[1,128], index: 8, kind: input, shape index: {}]
  %s9 = inlined_call_operand.hbm [shape: f32[16,128], index: 9, kind: output, shape index: {}]
  %s10 = sld [smem:[#allocation0]]
  $region66: #{tpu_custom_call.1} parent=0
    _
  %s12 = ssub.s32 1, %s10
  %s13 = scalar_select 0, %s12, %s10
  $region1: #{tpu_custom_call.1} parent=0
    #allocation2 [shape = 'u8[8192]{0}', space=vmem, size = 0x2000, scoped, tag = 'input window, operand 0, single buffered']
    #allocation3 [shape = 's32[1]{0}', space=sflag, size = 0x4, scoped, tag = 'scoped memory for tpu_custom_call.1']
    #allocation4 [shape = 's32[1]{0}', space=sflag, size = 0x4, scoped, tag = 'scoped memory for tpu_custom_call.1']
    #allocation5 [shape = 'u8[16384]{0}', space=vmem, size = 0x4000, scoped, tag = 'input window, operand 1, single buffered']
    #allocation6 [shape = 's32[1]{0}', space=sflag, size = 0x4, scoped, tag = 'scoped memory for tpu_custom_call.1']
    #allocation7 [shape = 'u8[32768]{0}', space=vmem, size = 0x8000, scoped, tag = 'input window, operand 3, single buffered']
    #allocation8 [shape = 'u8[32768]{0}', space=vmem, size = 0x8000, scoped, tag = 'input window, operand 5, single buffered']
    #allocation9 [shape = 's32[1]{0}', space=sflag, size = 0x4, scoped, tag = 'scoped memory for tpu_custom_call.1']
    #allocation10 [shape = 'u8[32768]{0}', space=vmem, size = 0x8000, scoped, tag = 'input window, operand 7, single buffered']
    #allocation11 [shape = 'u8[8192]{0}', space=vmem, size = 0x2000, scoped, tag = 'output window, operand 0, single buffered']
    %14 = vsyncpa [#allocation3], 0
    %15 = vsyncpa [#allocation6], 0
    %16 = vsyncpa [#allocation9], 0
    %17 = vsyncpa [#allocation4], 0
    // Predicated region
    $region2: #{tpu_custom_call.1} parent=1 // pred_check
      _
    $region3: #{tpu_custom_call.1} parent=1 // pred_check_branch
      %19 = sbr.rel (0) target = $region5
    $region4: #{tpu_custom_call.1} parent=1 // pred_region
      %21 = vsyncadd [#allocation3], 0
      %s22 = sshll.u32 %s0, 4
      %s23 = int_to_ptr.hbm [resolvable:$true] %s22
      %s24 = sshll.u32 [#allocation2], 4
      %s25 = int_to_ptr.vmem [resolvable:$true] %s24
      %30 = dma.hbm_to_vmem [thread:$0]  %s23, 256, %s25, [#allocation3], 128, 128, 8
    $region5: #{tpu_custom_call.1} parent=1 // pred_fallthru
      _
    // Predicated region
    $region6: #{tpu_custom_call.1} parent=1 // pred_check
      _
    $region7: #{tpu_custom_call.1} parent=1 // pred_check_branch
      %32 = sbr.rel (0) target = $region9
    $region8: #{tpu_custom_call.1} parent=1 // pred_region
      %34 = vsyncadd [#allocation6], 0
      %s35 = sshll.u32 %s1, 4
      %s36 = int_to_ptr.hbm [resolvable:$true] %s35
      %s37 = sshll.u32 [#allocation5], 4
      %s38 = int_to_ptr.vmem [resolvable:$true] %s37
      %43 = dma.hbm_to_vmem [thread:$0]  %s36, 512, %s38, [#allocation6], 128, 128, 8
    $region9: #{tpu_custom_call.1} parent=1 // pred_fallthru
      _
    // Predicated region
    $region10: #{tpu_custom_call.1} parent=1 // pred_check
      _
    $region11: #{tpu_custom_call.1} parent=1 // pred_check_branch
      %45 = sbr.rel (0) target = $region13
    $region12: #{tpu_custom_call.1} parent=1 // pred_region
      _
    $region13: #{tpu_custom_call.1} parent=1 // pred_fallthru
      _
    // Predicated region
    $region14: #{tpu_custom_call.1} parent=1 // pred_check
      _
    $region15: #{tpu_custom_call.1} parent=1 // pred_check_branch
      %47 = sbr.rel (0) target = $region17
    $region16: #{tpu_custom_call.1} parent=1 // pred_region
      %49 = vsyncadd [#allocation6], 0
      %s50 = sshll.u32 %s3, 4
      %s51 = int_to_ptr.hbm [resolvable:$true] %s50
      %s52 = sshll.u32 [#allocation7], 4
      %s53 = int_to_ptr.vmem [resolvable:$true] %s52
      %58 = dma.hbm_to_vmem [thread:$0]  %s51, 1024, %s53, [#allocation6], 128, 128, 8
    $region17: #{tpu_custom_call.1} parent=1 // pred_fallthru
      _
    // Predicated region
    $region18: #{tpu_custom_call.1} parent=1 // pred_check
      _
    $region19: #{tpu_custom_call.1} parent=1 // pred_check_branch
      %60 = sbr.rel (0) target = $region21
    $region20: #{tpu_custom_call.1} parent=1 // pred_region
      _
    $region21: #{tpu_custom_call.1} parent=1 // pred_fallthru
      _
    // Predicated region
    $region22: #{tpu_custom_call.1} parent=1 // pred_check
      _
    $region23: #{tpu_custom_call.1} parent=1 // pred_check_branch
      %62 = sbr.rel (0) target = $region25
    $region24: #{tpu_custom_call.1} parent=1 // pred_region
      %64 = vsyncadd [#allocation9], 0
      %s65 = sshll.u32 %s5, 4
      %s66 = int_to_ptr.hbm [resolvable:$true] %s65
      %s67 = sshll.u32 [#allocation8], 4
      %s68 = int_to_ptr.vmem [resolvable:$true] %s67
      %73 = dma.hbm_to_vmem [thread:$0]  %s66, 1024, %s68, [#allocation9], 128, 128, 8
    $region25: #{tpu_custom_call.1} parent=1 // pred_fallthru
      _
    // Predicated region
    $region26: #{tpu_custom_call.1} parent=1 // pred_check
      _
    $region27: #{tpu_custom_call.1} parent=1 // pred_check_branch
      %75 = sbr.rel (0) target = $region29
    $region28: #{tpu_custom_call.1} parent=1 // pred_region
      _
    $region29: #{tpu_custom_call.1} parent=1 // pred_fallthru
      _
    // Predicated region
    $region30: #{tpu_custom_call.1} parent=1 // pred_check
      _
    $region31: #{tpu_custom_call.1} parent=1 // pred_check_branch
      %77 = sbr.rel (0) target = $region33
    $region32: #{tpu_custom_call.1} parent=1 // pred_region
      %79 = vsyncadd [#allocation9], 0
      %s80 = sshll.u32 %s7, 4
      %s81 = int_to_ptr.hbm [resolvable:$true] %s80
      %s82 = sshll.u32 [#allocation10], 4
      %s83 = int_to_ptr.vmem [resolvable:$true] %s82
      %88 = dma.hbm_to_vmem [thread:$0]  %s81, 1024, %s83, [#allocation9], 128, 128, 8
    $region33: #{tpu_custom_call.1} parent=1 // pred_fallthru
      _
    // Predicated region
    $region34: #{tpu_custom_call.1} parent=1 // pred_check
      _
    $region35: #{tpu_custom_call.1} parent=1 // pred_check_branch
      %90 = sbr.rel (0) target = $region37
    $region36: #{tpu_custom_call.1} parent=1 // pred_region
      _
    $region37: #{tpu_custom_call.1} parent=1 // pred_fallthru
      _
    // Predicated region
    $region38: #{tpu_custom_call.1} parent=1 // pred_check
      _
    $region39: #{tpu_custom_call.1} parent=1 // pred_check_branch
      %92 = sbr.rel (0) target = $region41
    $region40: #{tpu_custom_call.1} parent=1 // pred_region
      %94 = dma.done [#allocation3], 256
    $region41: #{tpu_custom_call.1} parent=1 // pred_fallthru
      _
    // Predicated region
    $region42: #{tpu_custom_call.1} parent=1 // pred_check
      _
    $region43: #{tpu_custom_call.1} parent=1 // pred_check_branch
      %96 = sbr.rel (0) target = $region45
    $region44: #{tpu_custom_call.1} parent=1 // pred_region
      %98 = dma.done [#allocation6], 512
    $region45: #{tpu_custom_call.1} parent=1 // pred_fallthru
      _
    // Predicated region
    $region46: #{tpu_custom_call.1} parent=1 // pred_check
      _
    $region47: #{tpu_custom_call.1} parent=1 // pred_check_branch
      %100 = sbr.rel (0) target = $region49
    $region48: #{tpu_custom_call.1} parent=1 // pred_region
      %102 = dma.done [#allocation6], 1024
    $region49: #{tpu_custom_call.1} parent=1 // pred_fallthru
      _
    // Predicated region
    $region50: #{tpu_custom_call.1} parent=1 // pred_check
      _
    $region51: #{tpu_custom_call.1} parent=1 // pred_check_branch
      %104 = sbr.rel (0) target = $region53
    $region52: #{tpu_custom_call.1} parent=1 // pred_region
      %106 = dma.done [#allocation9], 1024
    $region53: #{tpu_custom_call.1} parent=1 // pred_fallthru
      _
    // Predicated region
    $region54: #{tpu_custom_call.1} parent=1 // pred_check
      _
    $region55: #{tpu_custom_call.1} parent=1 // pred_check_branch
      %108 = sbr.rel (0) target = $region57
    $region56: #{tpu_custom_call.1} parent=1 // pred_region
      %110 = dma.done [#allocation9], 1024
    $region57: #{tpu_custom_call.1} parent=1 // pred_fallthru
      _
    %v111 = vld [vmem:[#allocation2] sm:$0xff]
    %v112 = vld [vmem:[#allocation2 + $0x8] sm:$0xff]
    %v113 = vld [vmem:[#allocation5] sm:$0xff]
    %v114 = vld [vmem:[#allocation5 + $0x8] sm:$0xff]
    %v115 = vld [vmem:[#allocation5 + $0x10] sm:$0xff]
    %v116 = vld [vmem:[#allocation5 + $0x18] sm:$0xff]
    %v117 = vld [vmem:[%s2] sm:$0x1]
    %v119 = vperm.slane %v117, 0
    %vm121 = vcmask 261120
    %v123 = vsel %vm121, %v111, 0
    %v126 = vsel %vm121, %v112, 0
    %128 = vmatpush.msra.mxu0 0.0
    %129 = vmatpush.msra.mxu0 0.0
    %130 = vmatpush.msra.mxu0 0.0
    %131 = vmatpush.msra.mxu0 0.0
    %132 = vmatpush.msra.mxu0 0.0
    %133 = vmatpush.msra.mxu0 0.0
    %134 = vmatpush.msra.mxu0 0.0
    %135 = vmatpush.msra.mxu0 0.0
    %136 = vmatpush.msra.mxu0 0.0
    %137 = vmatpush.msra.mxu0 0.0
    %138 = vmatpush.msra.mxu0 0.0
    %139 = vmatpush.msra.mxu0 0.0
    %140 = vmatpush.msra.mxu0 %v116
    %141 = vmatpush.msra.mxu0 %v115
    %142 = vmatpush.msra.mxu0 %v114
    %143 = vmatpush.msra.mxu0 %v113
    %144 = vmatmul.f32.gmra.mxu0 %v123
    %v145 = vpop.f32.mrf.mxu0
    %v146 = vadd.f32 %v119, %v145
    %147 = vmatmul.f32.gmra.mxu0 %v126
    %v148 = vpop.f32.mrf.mxu0
    %v149 = vadd.f32 %v119, %v148
    %150 = vdwg.mxu0
    %v151 = vmax.f32 %v146, 0.0
    %v152 = vmax.f32 %v149, 0.0
    %v153 = vld [vmem:[#allocation7] sm:$0xff]
    %v154 = vld [vmem:[#allocation7 + $0x8] sm:$0xff]
    %v155 = vld [vmem:[#allocation7 + $0x10] sm:$0xff]
    %v156 = vld [vmem:[#allocation7 + $0x18] sm:$0xff]
    %v157 = vld [vmem:[#allocation7 + $0x20] sm:$0xff]
    %v158 = vld [vmem:[#allocation7 + $0x28] sm:$0xff]
    %v159 = vld [vmem:[#allocation7 + $0x30] sm:$0xff]
    %v160 = vld [vmem:[#allocation7 + $0x38] sm:$0xff]
    %v161 = vld [vmem:[%s4] sm:$0x1]
    %v163 = vperm.slane %v161, 0
    %vm165 = vcmask 523264
    %v167 = vsel %vm165, %v151, 0
    %v170 = vsel %vm165, %v152, 0
    %172 = vmatpush.msra.mxu0 0.0
    %173 = vmatpush.msra.mxu0 0.0
    %174 = vmatpush.msra.mxu0 0.0
    %175 = vmatpush.msra.mxu0 0.0
    %176 = vmatpush.msra.mxu0 0.0
    %177 = vmatpush.msra.mxu0 0.0
    %178 = vmatpush.msra.mxu0 0.0
    %179 = vmatpush.msra.mxu0 0.0
    %180 = vmatpush.msra.mxu0 %v160
    %181 = vmatpush.msra.mxu0 %v159
    %182 = vmatpush.msra.mxu0 %v158
    %183 = vmatpush.msra.mxu0 %v157
    %184 = vmatpush.msra.mxu0 %v156
    %185 = vmatpush.msra.mxu0 %v155
    %186 = vmatpush.msra.mxu0 %v154
    %187 = vmatpush.msra.mxu0 %v153
    %188 = vmatmul.f32.gmra.mxu0 %v167
    %v189 = vpop.f32.mrf.mxu0
    %v190 = vadd.f32 %v163, %v189
    %191 = vmatmul.f32.gmra.mxu0 %v170
    %v192 = vpop.f32.mrf.mxu0
    %v193 = vadd.f32 %v163, %v192
    %194 = vdwg.mxu0
    %v195 = vmax.f32 %v190, 0.0
    %v196 = vmax.f32 %v193, 0.0
    %v197 = vld [vmem:[#allocation8] sm:$0xff]
    %v198 = vld [vmem:[#allocation8 + $0x8] sm:$0xff]
    %v199 = vld [vmem:[#allocation8 + $0x10] sm:$0xff]
    %v200 = vld [vmem:[#allocation8 + $0x18] sm:$0xff]
    %v201 = vld [vmem:[#allocation8 + $0x20] sm:$0xff]
    %v202 = vld [vmem:[#allocation8 + $0x28] sm:$0xff]
    %v203 = vld [vmem:[#allocation8 + $0x30] sm:$0xff]
    %v204 = vld [vmem:[#allocation8 + $0x38] sm:$0xff]
    %v205 = vld [vmem:[%s6] sm:$0x1]
    %v207 = vperm.slane %v205, 0
    %v210 = vsel %vm165, %v195, 0
    %v213 = vsel %vm165, %v196, 0
    %215 = vmatpush.msra.mxu0 0.0
    %216 = vmatpush.msra.mxu0 0.0
    %217 = vmatpush.msra.mxu0 0.0
    %218 = vmatpush.msra.mxu0 0.0
    %219 = vmatpush.msra.mxu0 0.0
    %220 = vmatpush.msra.mxu0 0.0
    %221 = vmatpush.msra.mxu0 0.0
    %222 = vmatpush.msra.mxu0 0.0
    %223 = vmatpush.msra.mxu0 %v204
    %224 = vmatpush.msra.mxu0 %v203
    %225 = vmatpush.msra.mxu0 %v202
    %226 = vmatpush.msra.mxu0 %v201
    %227 = vmatpush.msra.mxu0 %v200
    %228 = vmatpush.msra.mxu0 %v199
    %229 = vmatpush.msra.mxu0 %v198
    %230 = vmatpush.msra.mxu0 %v197
    %231 = vmatmul.f32.gmra.mxu0 %v210
    %v232 = vpop.f32.mrf.mxu0
    %v233 = vadd.f32 %v207, %v232
    %234 = vmatmul.f32.gmra.mxu0 %v213
    %v235 = vpop.f32.mrf.mxu0
    %v236 = vadd.f32 %v207, %v235
    %237 = vdwg.mxu0
    %v238 = vmax.f32 %v233, 0.0
    %v239 = vmax.f32 %v236, 0.0
    %v240 = vld [vmem:[#allocation10] sm:$0xff]
    %v241 = vld [vmem:[#allocation10 + $0x8] sm:$0xff]
    %v242 = vld [vmem:[#allocation10 + $0x10] sm:$0xff]
    %v243 = vld [vmem:[#allocation10 + $0x18] sm:$0xff]
    %v244 = vld [vmem:[#allocation10 + $0x20] sm:$0xff]
    %v245 = vld [vmem:[#allocation10 + $0x28] sm:$0xff]
    %v246 = vld [vmem:[#allocation10 + $0x30] sm:$0xff]
    %v247 = vld [vmem:[#allocation10 + $0x38] sm:$0xff]
    %v248 = vld [vmem:[%s8] sm:$0x1]
    %v250 = vperm.slane %v248, 0
    %v253 = vsel %vm165, %v238, 0
    %v256 = vsel %vm165, %v239, 0
    %258 = vmatpush.msra.mxu0 0.0
    %259 = vmatpush.msra.mxu0 0.0
    %260 = vmatpush.msra.mxu0 0.0
    %261 = vmatpush.msra.mxu0 0.0
    %262 = vmatpush.msra.mxu0 0.0
    %263 = vmatpush.msra.mxu0 0.0
    %264 = vmatpush.msra.mxu0 0.0
    %265 = vmatpush.msra.mxu0 0.0
    %266 = vmatpush.msra.mxu0 %v247
    %267 = vmatpush.msra.mxu0 %v246
    %268 = vmatpush.msra.mxu0 %v245
    %269 = vmatpush.msra.mxu0 %v244
    %270 = vmatpush.msra.mxu0 %v243
    %271 = vmatpush.msra.mxu0 %v242
    %272 = vmatpush.msra.mxu0 %v241
    %273 = vmatpush.msra.mxu0 %v240
    %274 = vmatmul.f32.gmra.mxu0 %v253
    %v275 = vpop.f32.mrf.mxu0
    %v276 = vadd.f32 %v250, %v275
    %277 = vmatmul.f32.gmra.mxu0 %v256
    %v278 = vpop.f32.mrf.mxu0
    %v279 = vadd.f32 %v250, %v278
    %280 = vdwg.mxu0
    %281 = vst [vmem:[#allocation11] sm:$0xff] %v276
    %282 = vst [vmem:[#allocation11 + $0x8] sm:$0xff] %v279
    // Predicated region
    $region58: #{tpu_custom_call.1} parent=1 // pred_check
      _
    $region59: #{tpu_custom_call.1} parent=1 // pred_check_branch
      %284 = sbr.rel (0) target = $region61
    $region60: #{tpu_custom_call.1} parent=1 // pred_region
      %286 = vsyncadd [#allocation4], 0
      %s287 = sshll.u32 [#allocation11], 4
      %s288 = int_to_ptr.vmem [resolvable:$true] %s287
      %s289 = sshll.u32 %s9, 4
      %s290 = int_to_ptr.hbm [resolvable:$true] %s289
      %295 = dma.vmem_to_hbm [thread:$0]  %s288, 256, %s290, [#allocation4], 128, 128, 8
    $region61: #{tpu_custom_call.1} parent=1 // pred_fallthru
      _
    // Predicated region
    $region62: #{tpu_custom_call.1} parent=1 // pred_check
      _
    $region63: #{tpu_custom_call.1} parent=1 // pred_check_branch
      %297 = sbr.rel (0) target = $region65
    $region64: #{tpu_custom_call.1} parent=1 // pred_region
      %299 = dma.done [#allocation4], 256
    $region65: #{tpu_custom_call.1} parent=1 // pred_fallthru
      _
    %300 = vsyncpa [#allocation3], 1
    %301 = vsyncpa [#allocation6], 1
    %302 = vsyncpa [#allocation9], 1
    %303 = vsyncpa [#allocation4], 1

</llo_original>
